<compile_context>
chip_gen: v7x
topology: tpu7x:2x2x1
jax: 0.10.0
libtpu: 0.0.40
codegen_flags: <defaults>
</compile_context>

<pallas_src>
import functools

import jax
import jax.numpy as jnp
from jax.experimental import pallas as pl
from jax.experimental.pallas import tpu as pltpu


def _round_up(x, m):
    return (x + m - 1) // m * m


# ----------------------------- Pallas kernels -----------------------------

def _matmul_stats_kernel(co, b_ref, a_ref, y_ref, sum_ref, sq_ref):
    """One (COr, K) @ (K, tm) MXU matmul per grid step (full K, f32 accum).

    Channels sit on sublanes and the flattened spatial index on lanes, so the
    bf16 y store is lane-dense even for tiny CO.  Per-channel sum /
    sum-of-squares (BatchNorm training batch stats for this tile) are emitted
    from the f32 accumulator so the BN pass never re-reads y for statistics."""
    acc = jnp.dot(b_ref[...], a_ref[...], preferred_element_type=jnp.float32)
    y_ref[...] = acc[:co, :].astype(y_ref.dtype)
    sum_ref[...] = jnp.sum(acc, axis=1, keepdims=True)
    sq_ref[...] = jnp.sum(acc * acc, axis=1, keepdims=True)


def _bn_apply_kernel(apply_relu, y_ref, scale_ref, shift_ref, o_ref):
    """Folded BatchNorm (y*scale + shift) + optional ReLU.

    y arrives in bf16; all elementwise math is done in f32 (v5e-friendly)."""
    z = y_ref[...].astype(jnp.float32) * scale_ref[...] + shift_ref[...]
    if apply_relu:
        z = jnp.maximum(z, 0.0)
    o_ref[...] = z


# --------------------------------- glue -----------------------------------

def _phase_operands(x, weight, stride):
    """Sub-pixel decomposition of ConvTranspose2d (padding=0, dilation=1,
    groups=1).  Each output parity phase (p_h, p_w) is a dense correlation of
    x with the kernel taps congruent to that phase, laid out directly in the
    transposed form the Pallas matmul consumes:
      A: (P, Kmax, M)  patches  (K on sublanes, M = N*OHp*OWp on lanes)
      B: (P, CO,  Kmax) tap weights
    Phases with fewer taps are zero-padded along K (stats-safe)."""
    N, CI, H, W = x.shape
    _, CO, KH, KW = weight.shape
    s = stride
    if s == 2:                      # forward() crops to [:2H, :2W] when stride==2
        OHp, OWp = H, W
    else:
        OHp, OWp = H + KH - 1, W + KW - 1
    M = N * OHp * OWp
    Kmax = CI * (-(-KH // s)) * (-(-KW // s))

    A_list, B_list = [], []
    for ph in range(s):
        for pw in range(s):
            Th = (KH - ph + s - 1) // s         # taps kh ≡ ph (mod s)
            Tw = (KW - pw + s - 1) // s
            if Th <= 0 or Tw <= 0:              # degenerate (kernel < stride)
                A_list.append(jnp.zeros((Kmax, M), x.dtype))
                B_list.append(jnp.zeros((CO, Kmax), weight.dtype))
                continue
            pad_t, pad_b = Th - 1, max(0, OHp - H)
            pad_l, pad_r = Tw - 1, max(0, OWp - W)
            x_pad = jnp.pad(x, ((0, 0), (0, 0), (pad_t, pad_b), (pad_l, pad_r)))
            cols, taps = [], []
            for u in range(Th):
                for v in range(Tw):
                    cols.append(x_pad[:, :, u:u + OHp, v:v + OWp])   # (N,CI,OHp,OWp)
                    kh = ph + s * (Th - 1 - u)
                    kw = pw + s * (Tw - 1 - v)
                    taps.append(weight[:, :, kh, kw])                # (CI,CO)
            T = Th * Tw
            patches = jnp.stack(cols, axis=2)                        # (N,CI,T,OHp,OWp)
            patches = jnp.transpose(patches, (1, 2, 0, 3, 4))        # (CI,T,N,OHp,OWp)
            patches = patches.reshape(CI * T, M)                     # K index = ci*T + t
            w_p = jnp.stack(taps, axis=1)                            # (CI,T,CO)
            w_p = jnp.transpose(w_p, (2, 0, 1)).reshape(CO, CI * T)  # same K ordering
            kpad = Kmax - CI * T
            if kpad:
                patches = jnp.pad(patches, ((0, kpad), (0, 0)))
                w_p = jnp.pad(w_p, ((0, 0), (0, kpad)))
            A_list.append(patches)
            B_list.append(w_p)

    A = jnp.stack(A_list, axis=0)       # (P, Kmax, M)
    B = jnp.stack(B_list, axis=0)       # (P, CO, Kmax)
    return A, B, (N, OHp, OWp, s * s)


def _conv_matmul_stats(A, B, co, *, tm, vmem_limit):
    P, Kp, Mp = A.shape
    COr = B.shape[1]
    nM = Mp // tm
    flops = 2 * P * COr * Kp * Mp
    bytes_accessed = (A.size * A.dtype.itemsize + B.size * B.dtype.itemsize
                      + P * co * Mp * 2 + 2 * P * nM * COr * 4)
    return pl.pallas_call(
        functools.partial(_matmul_stats_kernel, co),
        out_shape=(
            jax.ShapeDtypeStruct((P, co, Mp), jnp.bfloat16),     # y (lane-dense, bf16)
            jax.ShapeDtypeStruct((P, nM, COr, 1), jnp.float32),  # per-tile channel sums
            jax.ShapeDtypeStruct((P, nM, COr, 1), jnp.float32),  # per-tile channel sumsq
        ),
        grid=(P, nM),
        in_specs=[
            pl.BlockSpec((None, COr, Kp), lambda p, i: (p, 0, 0)),  # B resident per phase
            pl.BlockSpec((None, Kp, tm), lambda p, i: (p, 0, i)),
        ],
        out_specs=[
            pl.BlockSpec((None, co, tm), lambda p, i: (p, 0, i)),
            pl.BlockSpec((None, None, COr, 1), lambda p, i: (p, i, 0, 0)),
            pl.BlockSpec((None, None, COr, 1), lambda p, i: (p, i, 0, 0)),
        ],
        compiler_params=pltpu.CompilerParams(
            dimension_semantics=("parallel", "parallel"),
            vmem_limit_bytes=vmem_limit),
        cost_estimate=pl.CostEstimate(flops=flops, transcendentals=0,
                                      bytes_accessed=bytes_accessed),
    )(B, A)


def _bn_apply(y, scale, shift, apply_relu, *, tmb, vmem_limit):
    P, co, Mp = y.shape
    return pl.pallas_call(
        functools.partial(_bn_apply_kernel, apply_relu),
        out_shape=jax.ShapeDtypeStruct((P, co, Mp), jnp.float32),
        grid=(P, Mp // tmb),
        in_specs=[
            pl.BlockSpec((None, co, tmb), lambda p, i: (p, 0, i)),
            pl.BlockSpec((co, 1), lambda p, i: (0, 0)),
            pl.BlockSpec((co, 1), lambda p, i: (0, 0)),
        ],
        out_specs=pl.BlockSpec((None, co, tmb), lambda p, i: (p, 0, i)),
        compiler_params=pltpu.CompilerParams(
            dimension_semantics=("parallel", "parallel"),
            vmem_limit_bytes=vmem_limit),
    )(y, scale, shift)


def deconv2d_forward(x, weight, gamma, beta, *, stride=1, relu=True, bn=True,
                     eps=1e-5):
    """Forward pass of Deconv2d (conv bias absent because bn=True by default)."""
    assert stride in (1, 2)
    N, CI, H, W = x.shape
    assert weight.shape[0] == CI
    CO = weight.shape[1]

    if not bn:
        # TODO(synk): mirrors the upstream quirk verbatim — when self.bn is
        # None the conv output `y` is never assigned back to `x`, so the
        # module returns relu(x) (or x), not the deconv result.
        return jnp.maximum(x, 0.0) if relu else x

    # bf16 MXU operands (accumulation stays f32 inside the kernel), transposed
    # layout: A (P, K, M), B (P, CO, K).
    A, B, (n, ohp, owp, P) = _phase_operands(x.astype(jnp.bfloat16),
                                             weight.astype(jnp.bfloat16), stride)
    M = n * ohp * owp
    Kdim = A.shape[1]

    # K padding (bf16 sublane packing granule = 16); zero rows are stats-safe.
    Kp = _round_up(Kdim, 16)
    if Kp != Kdim:
        A = jnp.pad(A, ((0, 0), (0, Kp - Kdim), (0, 0)))
        B = jnp.pad(B, ((0, 0), (0, 0), (0, Kp - Kdim)))
    COr = _round_up(CO, 8)
    if COr != CO:
        B = jnp.pad(B, ((0, 0), (0, COr - CO), (0, 0)))

    # M tile: lane-dense multiple of 128, as large as comfortably fits VMEM.
    m_blocks = -(-M // 128)
    tmax_blocks = 16                                  # <= 2048-lane tiles
    if P == 1 and m_blocks >= 2:                      # stride==1: keep >=2 M tiles
        tmax_blocks = min(tmax_blocks, max(1, m_blocks // 2))   # v7x: 2 TCs
    tm_blocks = min(tmax_blocks, m_blocks)
    while tm_blocks > 1 and 2 * Kp * (tm_blocks * 128) * 2 > (12 << 20):
        tm_blocks = max(1, tm_blocks // 2)            # keep A double-buffer small
    tm = tm_blocks * 128
    Mp = _round_up(M, tm)
    if Mp != M:
        A = jnp.pad(A, ((0, 0), (0, 0), (0, Mp - M)))   # zero cols: stats-safe
    nM = Mp // tm

    # BN pass tile: grow toward a full (CO, Mp) lane-dense panel per step.
    tmb = tm
    while Mp % (tmb * 2) == 0 and CO * (tmb * 2) * 6 * 2 <= (12 << 20):
        tmb *= 2

    vmem_need = (2 * (Kp * tm + COr * Kp + CO * tm) * 2
                 + 2 * CO * tmb * 6 + 4 * nM * COr * 4)
    vmem_limit = int(min(max(vmem_need + (8 << 20), 32 << 20), 64 << 20))

    y, s1, s2 = _conv_matmul_stats(A, B, CO, tm=tm, vmem_limit=vmem_limit)

    # Fold BN (training-mode biased batch statistics) into scale/shift.
    cnt = float(P * M)                               # = N * OH * OW per channel
    tot = jnp.sum(s1, axis=(0, 1, 3))[:CO]
    totsq = jnp.sum(s2, axis=(0, 1, 3))[:CO]
    mean = tot / cnt
    var = jnp.maximum(totsq / cnt - mean * mean, 0.0)
    scale = gamma.astype(jnp.float32) * jax.lax.rsqrt(var + eps)
    shift = beta.astype(jnp.float32) - mean * scale

    out = _bn_apply(y, scale.reshape(CO, 1), shift.reshape(CO, 1), relu,
                    tmb=tmb, vmem_limit=vmem_limit)

    out = out[:, :, :M]                              # drop M padding columns
    # TODO(synk): the parity interleave back to NCHW stays in XLA; fusing it
    # into the BN out_spec needs an (N, OH/2, 2, OW/2, 2, CO)-style or NHWC
    # consumer layout to stay lane-dense, which the NCHW contract forbids.
    if stride == 2:
        out = out.reshape(stride, stride, CO, n, ohp, owp)
        out = jnp.transpose(out, (3, 2, 4, 0, 5, 1))
        out = out.reshape(n, CO, stride * ohp, stride * owp)
    else:
        out = jnp.transpose(out.reshape(CO, n, ohp, owp), (1, 0, 2, 3))
    return out


# ------------------------------ pure-JAX ref -------------------------------

def _reference_forward(x, weight, gamma, beta, *, stride, relu=True, eps=1e-5):
    N, CI, H, W = x.shape
    _, CO, KH, KW = weight.shape
    w_oihw = jnp.transpose(jnp.flip(weight, axis=(2, 3)), (1, 0, 2, 3))
    y = jax.lax.conv_general_dilated(
        x, w_oihw, window_strides=(1, 1),
        padding=[(KH - 1, KH - 1), (KW - 1, KW - 1)],
        lhs_dilation=(stride, stride),
        dimension_numbers=("NCHW", "OIHW", "NCHW"))
    if stride == 2:
        y = y[:, :, :2 * H, :2 * W]
    mean = jnp.mean(y, axis=(0, 2, 3), keepdims=True)
    var = jnp.mean((y - mean) ** 2, axis=(0, 2, 3), keepdims=True)
    scale = gamma.reshape(1, -1, 1, 1) * jax.lax.rsqrt(var + eps)
    shift = beta.reshape(1, -1, 1, 1) - mean * scale
    y_q = y.astype(jnp.bfloat16).astype(jnp.float32)   # kernel stores y in bf16
    out = y_q * scale + shift
    return jnp.maximum(out, 0.0) if relu else out


# ---------------------------------- main -----------------------------------

if __name__ == "__main__":
    key = jax.random.PRNGKey(0)
    kx, kw = jax.random.split(key)

    N, CI, H, W = 2, 4, 16, 16
    CO, K, stride = 8, 3, 2

    x = jax.random.normal(kx, (N, CI, H, W), jnp.float32)
    # xavier_uniform-style deterministic init for ConvTranspose2d weight (CI, CO, KH, KW)
    fan_in, fan_out = CO * K * K, CI * K * K
    limit = (6.0 / (fan_in + fan_out)) ** 0.5
    weight = jax.random.uniform(kw, (CI, CO, K, K), jnp.float32, -limit, limit)
    gamma = jnp.ones((CO,), jnp.float32)    # BN weight init (ones)
    beta = jnp.zeros((CO,), jnp.float32)    # BN bias init (zeros)

    fwd = jax.jit(functools.partial(deconv2d_forward, stride=stride,
                                    relu=True, bn=True))
    out = fwd(x, weight, gamma, beta)
    jax.block_until_ready(out)

    assert out.shape == (N, CO, 2 * H, 2 * W), out.shape

    # Reference mirrors the kernel's quantization: bf16 MXU operands, f32
    # accumulation/statistics, bf16 intermediate y before the BN apply.
    xq = x.astype(jnp.bfloat16).astype(jnp.float32)
    wq = weight.astype(jnp.bfloat16).astype(jnp.float32)
    ref = _reference_forward(xq, wq, gamma, beta, stride=stride, relu=True)
    max_err = float(jnp.max(jnp.abs(out - ref)))
    assert jnp.allclose(out, ref, rtol=1e-2, atol=1e-2), max_err

    print("KERNEL_OK")
</pallas_src>

<mosaic_0001>
module attributes {stable_mosaic.version = 11 : i64} {
  func.func @_matmul_stats_kernel(%arg0: i32, %arg1: i32, %arg2: memref<1x8x16xbf16, #tpu.memory_space<vmem>>, %arg3: memref<1x16x512xbf16, #tpu.memory_space<vmem>>, %arg4: memref<1x8x512xbf16, #tpu.memory_space<vmem>>, %arg5: memref<1x1x8x1xf32, #tpu.memory_space<vmem>>, %arg6: memref<1x1x8x1xf32, #tpu.memory_space<vmem>>) attributes {dimension_semantics = [#tpu.dimension_semantics<parallel>, #tpu.dimension_semantics<parallel>], iteration_bounds = array<i64: 4, 1>, scalar_prefetch = 0 : i64, scratch_operands = 0 : i64, tpu.core_type = #tpu.core_type<tc>, window_params = [{transform_indices = @transform_0, window_bounds = array<i64: 1, 8, 16>}, {transform_indices = @transform_1, window_bounds = array<i64: 1, 16, 512>}, {transform_indices = @transform_2, window_bounds = array<i64: 1, 8, 512>}, {transform_indices = @transform_3, window_bounds = array<i64: 1, 1, 8, 1>}, {transform_indices = @transform_4, window_bounds = array<i64: 1, 1, 8, 1>}]} {
    %c0 = arith.constant 0 : index
    %c0_0 = arith.constant 0 : index
    %c0_1 = arith.constant 0 : index
    %0 = vector.load %arg2[%c0, %c0_0, %c0_1] : memref<1x8x16xbf16, #tpu.memory_space<vmem>>, vector<1x8x16xbf16>
    %1 = vector.shape_cast %0 : vector<1x8x16xbf16> to vector<8x16xbf16>
    %c0_2 = arith.constant 0 : index
    %c0_3 = arith.constant 0 : index
    %c0_4 = arith.constant 0 : index
    %2 = vector.load %arg3[%c0_2, %c0_3, %c0_4] : memref<1x16x512xbf16, #tpu.memory_space<vmem>>, vector<1x16x512xbf16>
    %3 = vector.shape_cast %2 : vector<1x16x512xbf16> to vector<16x512xbf16>
    %cst = arith.constant dense<0.000000e+00> : vector<8x512xf32>
    %4 = tpu.matmul %1, %3, %cst {dimension_numbers = #tpu.dot_dimension_numbers<[1], [0], [0], [1], [0, 0, 1, 1], [], []>} : vector<8x16xbf16>, vector<16x512xbf16>, vector<8x512xf32> -> vector<8x512xf32>
    %5 = arith.truncf %4 : vector<8x512xf32> to vector<8x512xbf16>
    %c0_5 = arith.constant 0 : index
    %c0_6 = arith.constant 0 : index
    %c0_7 = arith.constant 0 : index
    %6 = vector.load %arg4[%c0_5, %c0_6, %c0_7] : memref<1x8x512xbf16, #tpu.memory_space<vmem>>, vector<1x8x512xbf16>
    %7 = vector.shape_cast %6 : vector<1x8x512xbf16> to vector<8x512xbf16>
    %8 = vector.shape_cast %5 : vector<8x512xbf16> to vector<1x8x512xbf16>
    tpu.vector_store %arg4[%c0_5, %c0_6, %c0_7], %8 {strides = array<i32>} : memref<1x8x512xbf16, #tpu.memory_space<vmem>>, vector<1x8x512xbf16>,
    %cst_8 = arith.constant dense<0.000000e+00> : vector<8xf32>
    %9 = vector.multi_reduction <add>, %4, %cst_8 [1] : vector<8x512xf32> to vector<8xf32>
    %10 = vector.shape_cast %9 : vector<8xf32> to vector<8x1xf32>
    %c0_9 = arith.constant 0 : index
    %c0_10 = arith.constant 0 : index
    %c0_11 = arith.constant 0 : index
    %c0_12 = arith.constant 0 : index
    %11 = vector.load %arg5[%c0_9, %c0_10, %c0_11, %c0_12] : memref<1x1x8x1xf32, #tpu.memory_space<vmem>>, vector<1x1x8x1xf32>
    %12 = vector.shape_cast %11 : vector<1x1x8x1xf32> to vector<8x1xf32>
    %13 = vector.shape_cast %10 : vector<8x1xf32> to vector<1x1x8x1xf32>
    tpu.vector_store %arg5[%c0_9, %c0_10, %c0_11, %c0_12], %13 {strides = array<i32>} : memref<1x1x8x1xf32, #tpu.memory_space<vmem>>, vector<1x1x8x1xf32>,
    %14 = arith.mulf %4, %4 : vector<8x512xf32>
    %cst_13 = arith.constant dense<0.000000e+00> : vector<8xf32>
    %15 = vector.multi_reduction <add>, %14, %cst_13 [1] : vector<8x512xf32> to vector<8xf32>
    %16 = vector.shape_cast %15 : vector<8xf32> to vector<8x1xf32>
    %c0_14 = arith.constant 0 : index
    %c0_15 = arith.constant 0 : index
    %c0_16 = arith.constant 0 : index
    %c0_17 = arith.constant 0 : index
    %17 = vector.load %arg6[%c0_14, %c0_15, %c0_16, %c0_17] : memref<1x1x8x1xf32, #tpu.memory_space<vmem>>, vector<1x1x8x1xf32>
    %18 = vector.shape_cast %17 : vector<1x1x8x1xf32> to vector<8x1xf32>
    %19 = vector.shape_cast %16 : vector<8x1xf32> to vector<1x1x8x1xf32>
    tpu.vector_store %arg6[%c0_14, %c0_15, %c0_16, %c0_17], %19 {strides = array<i32>} : memref<1x1x8x1xf32, #tpu.memory_space<vmem>>, vector<1x1x8x1xf32>,
    return
  }
  func.func @transform_0(%arg0: i32, %arg1: i32) -> (i32, i32, i32) {
    %c0_i32 = arith.constant 0 : i32
    %c0_i32_0 = arith.constant 0 : i32
    %c0_i32_1 = arith.constant 0 : i32
    return %arg0, %c0_i32, %c0_i32_0 : i32, i32, i32
  }
  func.func @transform_1(%arg0: i32, %arg1: i32) -> (i32, i32, i32) {
    %c0_i32 = arith.constant 0 : i32
    %c0_i32_0 = arith.constant 0 : i32
    return %arg0, %c0_i32, %arg1 : i32, i32, i32
  }
  func.func @transform_2(%arg0: i32, %arg1: i32) -> (i32, i32, i32) {
    %c0_i32 = arith.constant 0 : i32
    %c0_i32_0 = arith.constant 0 : i32
    return %arg0, %c0_i32, %arg1 : i32, i32, i32
  }
  func.func @transform_3(%arg0: i32, %arg1: i32) -> (i32, i32, i32, i32) {
    %c0_i32 = arith.constant 0 : i32
    %c0_i32_0 = arith.constant 0 : i32
    %c0_i32_1 = arith.constant 0 : i32
    return %arg0, %arg1, %c0_i32, %c0_i32_0 : i32, i32, i32, i32
  }
  func.func @transform_4(%arg0: i32, %arg1: i32) -> (i32, i32, i32, i32) {
    %c0_i32 = arith.constant 0 : i32
    %c0_i32_0 = arith.constant 0 : i32
    %c0_i32_1 = arith.constant 0 : i32
    return %arg0, %arg1, %c0_i32, %c0_i32_0 : i32, i32, i32, i32
  }
}

module attributes {stable_mosaic.version = 11 : i64} {
  func.func @_bn_apply_kernel(%arg0: i32, %arg1: i32, %arg2: memref<1x8x512xbf16, #tpu.memory_space<vmem>>, %arg3: memref<8x1xf32, #tpu.memory_space<vmem>>, %arg4: memref<8x1xf32, #tpu.memory_space<vmem>>, %arg5: memref<1x8x512xf32, #tpu.memory_space<vmem>>) attributes {dimension_semantics = [#tpu.dimension_semantics<parallel>, #tpu.dimension_semantics<parallel>], iteration_bounds = array<i64: 4, 1>, scalar_prefetch = 0 : i64, scratch_operands = 0 : i64, tpu.core_type = #tpu.core_type<tc>, window_params = [{transform_indices = @transform_0, window_bounds = array<i64: 1, 8, 512>}, {pipeline_mode = #tpu.pipeline_mode<synchronous>, transform_indices = @transform_1, window_bounds = array<i64: 8, 1>}, {pipeline_mode = #tpu.pipeline_mode<synchronous>, transform_indices = @transform_2, window_bounds = array<i64: 8, 1>}, {transform_indices = @transform_3, window_bounds = array<i64: 1, 8, 512>}]} {
    %c0 = arith.constant 0 : index
    %c0_0 = arith.constant 0 : index
    %c0_1 = arith.constant 0 : index
    %0 = vector.load %arg2[%c0, %c0_0, %c0_1] : memref<1x8x512xbf16, #tpu.memory_space<vmem>>, vector<1x8x512xbf16>
    %1 = vector.shape_cast %0 : vector<1x8x512xbf16> to vector<8x512xbf16>
    %2 = arith.extf %1 : vector<8x512xbf16> to vector<8x512xf32>
    %c0_2 = arith.constant 0 : index
    %c0_3 = arith.constant 0 : index
    %3 = vector.load %arg3[%c0_2, %c0_3] : memref<8x1xf32, #tpu.memory_space<vmem>>, vector<8x1xf32>
    %4 = vector.broadcast %3 : vector<8x1xf32> to vector<8x512xf32>
    %5 = arith.mulf %2, %4 : vector<8x512xf32>
    %c0_4 = arith.constant 0 : index
    %c0_5 = arith.constant 0 : index
    %6 = vector.load %arg4[%c0_4, %c0_5] : memref<8x1xf32, #tpu.memory_space<vmem>>, vector<8x1xf32>
    %7 = vector.broadcast %6 : vector<8x1xf32> to vector<8x512xf32>
    %8 = arith.addf %5, %7 : vector<8x512xf32>
    %cst = arith.constant 0.000000e+00 : f32
    %9 = vector.broadcast %cst : f32 to vector<8x512xf32>
    %10 = arith.maximumf %8, %9 : vector<8x512xf32>
    %c0_6 = arith.constant 0 : index
    %c0_7 = arith.constant 0 : index
    %c0_8 = arith.constant 0 : index
    %11 = vector.load %arg5[%c0_6, %c0_7, %c0_8] : memref<1x8x512xf32, #tpu.memory_space<vmem>>, vector<1x8x512xf32>
    %12 = vector.shape_cast %11 : vector<1x8x512xf32> to vector<8x512xf32>
    %13 = vector.shape_cast %10 : vector<8x512xf32> to vector<1x8x512xf32>
    tpu.vector_store %arg5[%c0_6, %c0_7, %c0_8], %13 {strides = array<i32>} : memref<1x8x512xf32, #tpu.memory_space<vmem>>, vector<1x8x512xf32>,
    return
  }
  func.func @transform_0(%arg0: i32, %arg1: i32) -> (i32, i32, i32) {
    %c0_i32 = arith.constant 0 : i32
    %c0_i32_0 = arith.constant 0 : i32
    return %arg0, %c0_i32, %arg1 : i32, i32, i32
  }
  func.func @transform_1(%arg0: i32, %arg1: i32) -> (i32, i32) {
    %c0_i32 = arith.constant 0 : i32
    %c0_i32_0 = arith.constant 0 : i32
    %c0_i32_1 = arith.constant 0 : i32
    return %c0_i32, %c0_i32_0 : i32, i32
  }
  func.func @transform_2(%arg0: i32, %arg1: i32) -> (i32, i32) {
    %c0_i32 = arith.constant 0 : i32
    %c0_i32_0 = arith.constant 0 : i32
    %c0_i32_1 = arith.constant 0 : i32
    return %c0_i32, %c0_i32_0 : i32, i32
  }
  func.func @transform_3(%arg0: i32, %arg1: i32) -> (i32, i32, i32) {
    %c0_i32 = arith.constant 0 : i32
    %c0_i32_0 = arith.constant 0 : i32
    return %arg0, %c0_i32, %arg1 : i32, i32, i32
  }
}

</mosaic_0001>

<llo_original>
// kernel: deconv2d_forward.3
$region0: #{deconv2d_forward.3}
  #allocation0 [shape = 'u32[]', space=smem, size = 0x4, offset = 0x4, fixed_abs, tag = 'smem constant byte address 0x4 - core index']
  #allocation1 [shape = 'u32[144,128]{1,0:T(1,128)}', space=vmem, size = 0x12000, scoped, tag = 'internal scratch']
  %s0 = inlined_call_operand.vmem [shape: bf16[4,8,512], index: 0, kind: input, shape index: {}]
  %s1 = inlined_call_operand.vmem [shape: f32[8,1], index: 1, kind: input, shape index: {}]
  %s2 = inlined_call_operand.vmem [shape: f32[8,1], index: 2, kind: input, shape index: {}]
  %s3 = inlined_call_operand.vmem [shape: f32[4,8,512], index: 3, kind: output, shape index: {}]
  %s4 = sld [smem:[#allocation0]]
  $region45: #{deconv2d_forward.3} parent=0
    _
  %s6 = ssub.s32 1, %s4
  %s7 = scalar_select 0, %s6, %s4
  loop: start=0, step=1, limit=6
  $region2: #{deconv2d_forward.3} parent=0 // loop_pre_header
    _
  $region3: #{deconv2d_forward.3} parent=0 // loop_header
    %s9 = sphi 0, %s13
    %p10 = scmp.ge.s32.totalorder %s9, 6
    %s16 = sphi 0, %s28
    %s17 = sphi 0, %s24
    %s18 = sphi 0, %s16
    %s19 = sphi 0, %s17
    %s20 = sphi 0, %s18
    %s21 = sphi 0, %s19
    %s33 = sphi 0, %s35
    %s36 = sphi 0, %s33
    %s37 = sphi 0, %s36
    %s53 = sphi 0, %s37
    %s57 = sphi 0, %s57
    %s59 = sphi 0, %s57
    %s60 = sphi 0, %s59
    %s74 = sphi 0, %s60
    %s78 = sphi 0, %s78
    %s80 = sphi 0, %s78
    %s81 = sphi 0, %s80
    %s95 = sphi 0, %s81
    %s103 = sphi 0, %s105
    %s106 = sphi 0, %s103
    %s107 = sphi 0, %s106
    %s123 = sphi 0, %s107
  $region4: #{deconv2d_forward.3} parent=0 // loop_header_branch
    %12 = sbr.rel (%p10) target = $region8
  $region5: #{deconv2d_forward.3} parent=0 // loop_body
    %s14 = ssub.s32 %s9, 1
    %s15 = ssub.s32 %s9, 2
    %s22 = sadd.s32 1, %s17
    %p23 = scmp.ge.s32.totalorder %s22, 1
    %s24 = scalar_select %p23, 0, %s22
    %s25 = sadd.s32 1, %s16
    %s26 = scalar_select %p23, %s25, %s16
    %p27 = scmp.ge.s32.totalorder %s26, 4
    %s28 = scalar_select %p27, 0, %s26
    %s29 = ssub.s32 %s16, %s28
    %s30 = ssub.s32 %s17, %s24
    %s31 = sor.u32 %s29, %s30
    %p32 = scmp.eq.s32.totalorder %s31, 0
    %s34 = sadd.s32 %s33, 1
    %s35 = scalar_select %p32, %s33, %s34
    %p38 = pneg %p32
    %p39 = scmp.eq.s32.totalorder %s9, 3
    %p40 = por %p38, %p39
    %p41 = scmp.ne.s32.totalorder %s33, %s36
    %p42 = scmp.eq.s32.totalorder %s9, 0
    %p43 = por %p41, %p42
    %p44 = scmp.ne.s32.totalorder %s33, %s36
    %p45 = scmp.eq.s32.totalorder %s14, 3
    %p46 = por %p44, %p45
    %p47 = scmp.ne.s32.totalorder %s36, %s37
    %p48 = scmp.eq.s32.totalorder %s14, 0
    %p49 = por %p47, %p48
    %p50 = scmp.ne.s32.totalorder %s36, %s37
    %p51 = scmp.eq.s32.totalorder %s15, 3
    %p52 = por %p50, %p51
    %p54 = scmp.ne.s32.totalorder %s37, %s53
    %p55 = scmp.eq.s32.totalorder %s15, 0
    %p56 = por %p54, %p55
    %s58 = sadd.s32 %s57, 1
    %p61 = scmp.eq.s32.totalorder %s9, 3
    %p62 = scmp.ne.s32.totalorder %s57, %s59
    %p63 = scmp.eq.s32.totalorder %s9, 0
    %p64 = por %p62, %p63
    %p65 = scmp.ne.s32.totalorder %s57, %s59
    %p66 = scmp.eq.s32.totalorder %s14, 3
    %p67 = por %p65, %p66
    %p68 = scmp.ne.s32.totalorder %s59, %s60
    %p69 = scmp.eq.s32.totalorder %s14, 0
    %p70 = por %p68, %p69
    %p71 = scmp.ne.s32.totalorder %s59, %s60
    %p72 = scmp.eq.s32.totalorder %s15, 3
    %p73 = por %p71, %p72
    %p75 = scmp.ne.s32.totalorder %s60, %s74
    %p76 = scmp.eq.s32.totalorder %s15, 0
    %p77 = por %p75, %p76
    %s79 = sadd.s32 %s78, 1
    %p82 = scmp.eq.s32.totalorder %s9, 3
    %p83 = scmp.ne.s32.totalorder %s78, %s80
    %p84 = scmp.eq.s32.totalorder %s9, 0
    %p85 = por %p83, %p84
    %p86 = scmp.ne.s32.totalorder %s78, %s80
    %p87 = scmp.eq.s32.totalorder %s14, 3
    %p88 = por %p86, %p87
    %p89 = scmp.ne.s32.totalorder %s80, %s81
    %p90 = scmp.eq.s32.totalorder %s14, 0
    %p91 = por %p89, %p90
    %p92 = scmp.ne.s32.totalorder %s80, %s81
    %p93 = scmp.eq.s32.totalorder %s15, 3
    %p94 = por %p92, %p93
    %p96 = scmp.ne.s32.totalorder %s81, %s95
    %p97 = scmp.eq.s32.totalorder %s15, 0
    %p98 = por %p96, %p97
    %s99 = ssub.s32 %s16, %s28
    %s100 = ssub.s32 %s17, %s24
    %s101 = sor.u32 %s99, %s100
    %p102 = scmp.eq.s32.totalorder %s101, 0
    %s104 = sadd.s32 %s103, 1
    %s105 = scalar_select %p102, %s103, %s104
    %p108 = pneg %p102
    %p109 = scmp.eq.s32.totalorder %s9, 3
    %p110 = por %p108, %p109
    %p111 = scmp.ne.s32.totalorder %s103, %s106
    %p112 = scmp.eq.s32.totalorder %s9, 0
    %p113 = por %p111, %p112
    %p114 = scmp.ne.s32.totalorder %s103, %s106
    %p115 = scmp.eq.s32.totalorder %s14, 3
    %p116 = por %p114, %p115
    %p117 = scmp.ne.s32.totalorder %s106, %s107
    %p118 = scmp.eq.s32.totalorder %s14, 0
    %p119 = por %p117, %p118
    %p120 = scmp.ne.s32.totalorder %s106, %s107
    %p121 = scmp.eq.s32.totalorder %s15, 3
    %p122 = por %p120, %p121
    %p124 = scmp.ne.s32.totalorder %s107, %s123
    %p125 = scmp.eq.s32.totalorder %s15, 0
    %p126 = por %p124, %p125
    %p127 = scmp.le.s32.totalorder 1, %s9
    %p128 = scmp.lt.s32.totalorder %s9, 5
    %p129 = pnand %p127, %p128
    %p130 = pneg %p129
    // Predicated region
    $region9: #{deconv2d_forward.3} parent=5 // pred_check
      _
    $region10: #{deconv2d_forward.3} parent=5 // pred_check_branch
      %132 = sbr.rel (%p129) target = $region12
    $region11: #{deconv2d_forward.3} parent=5 // pred_region
      %s133 = ssub.s32 %s9, 1
      // Predicated region
      $region13: #{deconv2d_forward.3} parent=11 // pred_check
        %p134 = pneg %p70
      $region14: #{deconv2d_forward.3} parent=11 // pred_check_branch
        %136 = sbr.rel (%p134) target = $region16
      $region15: #{deconv2d_forward.3} parent=11 // pred_region
        _
      $region16: #{deconv2d_forward.3} parent=11 // pred_fallthru
        _
      // Predicated region
      $region17: #{deconv2d_forward.3} parent=11 // pred_check
        %p137 = pneg %p91
      $region18: #{deconv2d_forward.3} parent=11 // pred_check_branch
        %139 = sbr.rel (%p137) target = $region20
      $region19: #{deconv2d_forward.3} parent=11 // pred_region
        _
      $region20: #{deconv2d_forward.3} parent=11 // pred_fallthru
        _
    $region12: #{deconv2d_forward.3} parent=5 // pred_fallthru
      _
    %p140 = scmp.lt.s32.totalorder %s9, 4
    // Predicated region
    $region21: #{deconv2d_forward.3} parent=5 // pred_check
      %p141 = pneg %p140
    $region22: #{deconv2d_forward.3} parent=5 // pred_check_branch
      %143 = sbr.rel (%p141) target = $region24
    $region23: #{deconv2d_forward.3} parent=5 // pred_region
      // Predicated region
      $region25: #{deconv2d_forward.3} parent=23 // pred_check
        %p144 = pneg %p43
      $region26: #{deconv2d_forward.3} parent=23 // pred_check_branch
        %146 = sbr.rel (%p144) target = $region28
      $region27: #{deconv2d_forward.3} parent=23 // pred_region
        %s147 = smul.u32 4, %s17
        %p148 = scmp.lt.s32.totalorder %s16, 3
        %s149 = scalar_select %p148, %s16, 3
        %p150 = scmp.lt.s32.totalorder %s147, 3
        %s151 = scalar_select %p150, %s147, 3
        %s152 = smul.addr %s149, 4
        %s153 = sadd.s32 %s151, %s152
        %s154 = smul.addr %s153, 4
        %s155 = scalar_lea.vmem %s0, %s154
        %s156 = smul.u32 4, %s17
      $region28: #{deconv2d_forward.3} parent=23 // pred_fallthru
        _
    $region24: #{deconv2d_forward.3} parent=5 // pred_fallthru
      _
    %p157 = scmp.le.s32.totalorder 1, %s9
    %p158 = scmp.lt.s32.totalorder %s9, 5
    %p159 = pnand %p157, %p158
    %p160 = pneg %p159
    // Predicated region
    $region29: #{deconv2d_forward.3} parent=5 // pred_check
      _
    $region30: #{deconv2d_forward.3} parent=5 // pred_check_branch
      %162 = sbr.rel (%p159) target = $region32
    $region31: #{deconv2d_forward.3} parent=5 // pred_region
      %s163 = ssub.s32 %s9, 1
      %s164 = smul.u32 4, %s19
      %p165 = scmp.lt.s32.totalorder %s18, 3
      %s166 = scalar_select %p165, %s18, 3
      %p167 = scmp.lt.s32.totalorder %s164, 3
      %s168 = scalar_select %p167, %s164, 3
      %s169 = smul.addr %s166, 4
      %s170 = sadd.s32 %s168, %s169
      %s171 = smul.addr %s170, 4
      %s172 = scalar_lea.vmem %s0, %s171
      %p173 = pneg %p49
      %p174 = pneg %p46
      %p175 = pneg %p70
      %p176 = pneg %p67
      %p177 = pneg %p91
      %p178 = pneg %p88
      %p179 = pneg %p119
      %p180 = pneg %p116
      %s181 = smul.u32 4, %s19
      %p182 = scmp.lt.s32.totalorder %s18, 3
      %s183 = scalar_select %p182, %s18, 3
      %p184 = scmp.lt.s32.totalorder %s181, 3
      %s185 = scalar_select %p184, %s181, 3
      %s186 = smul.addr %s183, 4
      %s187 = sadd.s32 %s185, %s186
      %s188 = smul.addr %s187, 8
      %s189 = scalar_lea.vmem %s3, %s188
      %s190 = smul.u32 4, %s19
      %p191 = scmp.lt.s32.totalorder %s18, 3
      %s192 = scalar_select %p191, %s18, 3
      %p193 = scmp.lt.s32.totalorder %s190, 3
      %s194 = scalar_select %p193, %s190, 3
      %s195 = smul.addr %s192, 4
      %s196 = sadd.s32 %s194, %s195
      %s197 = smul.addr %s196, 4
      %s198 = scalar_lea.vmem %s0, %s197
      %s199 = smul.u32 4, %s19
      %s200 = smul.u32 4, %s19
      %p201 = scmp.lt.s32.totalorder %s18, 3
      %s202 = scalar_select %p201, %s18, 3
      %p203 = scmp.lt.s32.totalorder %s200, 3
      %s204 = scalar_select %p203, %s200, 3
      %s205 = smul.addr %s202, 4
      %s206 = sadd.s32 %s204, %s205
      %s207 = smul.addr %s206, 8
      %s208 = scalar_lea.vmem %s3, %s207
      %s209 = smul.u32 4, %s19
      %v210 = vld [vmem:[%s198] sm:$0xff]
      %v211 = vld [vmem:[%s198 + $0x8] sm:$0xff]
      %v212 = vunpack.c.l.bf16 %v210
      %v213 = vunpack.c.h.bf16 %v210
      %v214 = vunpack.c.l.bf16 %v211
      %v215 = vunpack.c.h.bf16 %v211
      %v216 = vld [vmem:[%s1] sm:$0xff]
      %218 = vset.pattern.permute.xlu0 0
      %219 = vperm.xlu0 %218, %v216
      %v220 = vpop.permute.xlu0 %219
      %v222 = vmul.f32 %v212, %v220
      %v223 = vmul.f32 %v213, %v220
      %v224 = vmul.f32 %v214, %v220
      %v225 = vmul.f32 %v215, %v220
      %v226 = vld [vmem:[%s2] sm:$0xff]
      %228 = vset.pattern.permute.xlu0 0
      %229 = vperm.xlu0 %228, %v226
      %v230 = vpop.permute.xlu0 %229
      %v232 = vadd.f32 %v222, %v230
      %v233 = vadd.f32 %v223, %v230
      %v234 = vadd.f32 %v224, %v230
      %v235 = vadd.f32 %v225, %v230
      %v236 = vmax.f32 %v232, 0.0
      %v237 = vmax.f32 %v233, 0.0
      %v238 = vmax.f32 %v234, 0.0
      %v239 = vmax.f32 %v235, 0.0
      %240 = vst [vmem:[%s208] sm:$0xff] %v236
      %241 = vst [vmem:[%s208 + $0x8] sm:$0xff] %v237
      %242 = vst [vmem:[%s208 + $0x10] sm:$0xff] %v238
      %243 = vst [vmem:[%s208 + $0x18] sm:$0xff] %v239
      %s244 = smul.u32 4, %s19
      %p245 = scmp.lt.s32.totalorder %s18, 3
      %s246 = scalar_select %p245, %s18, 3
      %p247 = scmp.lt.s32.totalorder %s244, 3
      %s248 = scalar_select %p247, %s244, 3
      %s249 = smul.addr %s246, 4
      %s250 = sadd.s32 %s248, %s249
      %s251 = smul.addr %s250, 8
      %s252 = scalar_lea.vmem %s3, %s251
      // Predicated region
      $region33: #{deconv2d_forward.3} parent=31 // pred_check
        %p253 = pneg %p116
      $region34: #{deconv2d_forward.3} parent=31 // pred_check_branch
        %255 = sbr.rel (%p253) target = $region36
      $region35: #{deconv2d_forward.3} parent=31 // pred_region
        %s256 = smul.u32 4, %s19
      $region36: #{deconv2d_forward.3} parent=31 // pred_fallthru
        _
    $region32: #{deconv2d_forward.3} parent=5 // pred_fallthru
      _
    %p257 = scmp.le.s32.totalorder 2, %s9
    // Predicated region
    $region37: #{deconv2d_forward.3} parent=5 // pred_check
      %p258 = pneg %p257
    $region38: #{deconv2d_forward.3} parent=5 // pred_check_branch
      %260 = sbr.rel (%p258) target = $region40
    $region39: #{deconv2d_forward.3} parent=5 // pred_region
      %s261 = ssub.s32 %s9, 2
      // Predicated region
      $region41: #{deconv2d_forward.3} parent=39 // pred_check
        %p262 = pneg %p122
      $region42: #{deconv2d_forward.3} parent=39 // pred_check_branch
        %264 = sbr.rel (%p262) target = $region44
      $region43: #{deconv2d_forward.3} parent=39 // pred_region
        %s265 = smul.u32 4, %s21
        %p266 = scmp.lt.s32.totalorder %s20, 3
        %s267 = scalar_select %p266, %s20, 3
        %p268 = scmp.lt.s32.totalorder %s265, 3
        %s269 = scalar_select %p268, %s265, 3
        %s270 = smul.addr %s267, 4
        %s271 = sadd.s32 %s269, %s270
        %s272 = smul.addr %s271, 8
        %s273 = scalar_lea.vmem %s3, %s272
      $region44: #{deconv2d_forward.3} parent=39 // pred_fallthru
        _
    $region40: #{deconv2d_forward.3} parent=5 // pred_fallthru
      _
  $region6: #{deconv2d_forward.3} parent=0 // loop_footer
    %s13 = sadd.s32 1, %s9
  $region7: #{deconv2d_forward.3} parent=0 // loop_footer_branch
    %8 = sbr.rel target = $region3
  $region8: #{deconv2d_forward.3} parent=0 // loop_exit
    _

// kernel: deconv2d_forward.2
$region0: #{deconv2d_forward.2}
  #allocation0 [shape = 'u32[]', space=smem, size = 0x4, offset = 0x4, fixed_abs, tag = 'smem constant byte address 0x4 - core index']
  #allocation1 [shape = 'u32[144,128]{1,0:T(1,128)}', space=vmem, size = 0x12000, scoped, tag = 'internal scratch']
  %s0 = inlined_call_operand.vmem [shape: bf16[4,8,16], index: 0, kind: input, shape index: {}]
  %s1 = inlined_call_operand.vmem [shape: bf16[4,16,512], index: 1, kind: input, shape index: {}]
  %s2 = inlined_call_operand.vmem [shape: bf16[4,8,512], index: 2, kind: output, shape index: {0}]
  %s3 = inlined_call_operand.vmem [shape: f32[4,1,8,1], index: 3, kind: output, shape index: {1}]
  %s4 = inlined_call_operand.vmem [shape: f32[4,1,8,1], index: 4, kind: output, shape index: {2}]
  %5 = xla_tuple %s2, %s3, %s4
  %s6 = sld [smem:[#allocation0]]
  $region57: #{deconv2d_forward.2} parent=0
    _
  %s8 = ssub.s32 1, %s6
  %s9 = scalar_select 0, %s8, %s6
  loop: start=0, step=1, limit=6
  $region2: #{deconv2d_forward.2} parent=0 // loop_pre_header
    _
  $region3: #{deconv2d_forward.2} parent=0 // loop_header
    %s11 = sphi 0, %s15
    %p12 = scmp.ge.s32.totalorder %s11, 6
    %s18 = sphi 0, %s30
    %s19 = sphi 0, %s26
    %s20 = sphi 0, %s18
    %s21 = sphi 0, %s19
    %s22 = sphi 0, %s20
    %s23 = sphi 0, %s21
    %s33 = sphi 0, %s35
    %s36 = sphi 0, %s33
    %s37 = sphi 0, %s36
    %s53 = sphi 0, %s37
    %s61 = sphi 0, %s63
    %s64 = sphi 0, %s61
    %s65 = sphi 0, %s64
    %s81 = sphi 0, %s65
    %s89 = sphi 0, %s91
    %s92 = sphi 0, %s89
    %s93 = sphi 0, %s92
    %s109 = sphi 0, %s93
    %s117 = sphi 0, %s119
    %s120 = sphi 0, %s117
    %s121 = sphi 0, %s120
    %s137 = sphi 0, %s121
    %s145 = sphi 0, %s147
    %s148 = sphi 0, %s145
    %s149 = sphi 0, %s148
    %s165 = sphi 0, %s149
  $region4: #{deconv2d_forward.2} parent=0 // loop_header_branch
    %14 = sbr.rel (%p12) target = $region8
  $region5: #{deconv2d_forward.2} parent=0 // loop_body
    %s16 = ssub.s32 %s11, 1
    %s17 = ssub.s32 %s11, 2
    %s24 = sadd.s32 1, %s19
    %p25 = scmp.ge.s32.totalorder %s24, 1
    %s26 = scalar_select %p25, 0, %s24
    %s27 = sadd.s32 1, %s18
    %s28 = scalar_select %p25, %s27, %s18
    %p29 = scmp.ge.s32.totalorder %s28, 4
    %s30 = scalar_select %p29, 0, %s28
    %s31 = ssub.s32 %s18, %s30
    %p32 = scmp.eq.s32.totalorder %s31, 0
    %s34 = sadd.s32 %s33, 1
    %s35 = scalar_select %p32, %s33, %s34
    %p38 = pneg %p32
    %p39 = scmp.eq.s32.totalorder %s11, 3
    %p40 = por %p38, %p39
    %p41 = scmp.ne.s32.totalorder %s33, %s36
    %p42 = scmp.eq.s32.totalorder %s11, 0
    %p43 = por %p41, %p42
    %p44 = scmp.ne.s32.totalorder %s33, %s36
    %p45 = scmp.eq.s32.totalorder %s16, 3
    %p46 = por %p44, %p45
    %p47 = scmp.ne.s32.totalorder %s36, %s37
    %p48 = scmp.eq.s32.totalorder %s16, 0
    %p49 = por %p47, %p48
    %p50 = scmp.ne.s32.totalorder %s36, %s37
    %p51 = scmp.eq.s32.totalorder %s17, 3
    %p52 = por %p50, %p51
    %p54 = scmp.ne.s32.totalorder %s37, %s53
    %p55 = scmp.eq.s32.totalorder %s17, 0
    %p56 = por %p54, %p55
    %s57 = ssub.s32 %s18, %s30
    %s58 = ssub.s32 %s19, %s26
    %s59 = sor.u32 %s57, %s58
    %p60 = scmp.eq.s32.totalorder %s59, 0
    %s62 = sadd.s32 %s61, 1
    %s63 = scalar_select %p60, %s61, %s62
    %p66 = pneg %p60
    %p67 = scmp.eq.s32.totalorder %s11, 3
    %p68 = por %p66, %p67
    %p69 = scmp.ne.s32.totalorder %s61, %s64
    %p70 = scmp.eq.s32.totalorder %s11, 0
    %p71 = por %p69, %p70
    %p72 = scmp.ne.s32.totalorder %s61, %s64
    %p73 = scmp.eq.s32.totalorder %s16, 3
    %p74 = por %p72, %p73
    %p75 = scmp.ne.s32.totalorder %s64, %s65
    %p76 = scmp.eq.s32.totalorder %s16, 0
    %p77 = por %p75, %p76
    %p78 = scmp.ne.s32.totalorder %s64, %s65
    %p79 = scmp.eq.s32.totalorder %s17, 3
    %p80 = por %p78, %p79
    %p82 = scmp.ne.s32.totalorder %s65, %s81
    %p83 = scmp.eq.s32.totalorder %s17, 0
    %p84 = por %p82, %p83
    %s85 = ssub.s32 %s18, %s30
    %s86 = ssub.s32 %s19, %s26
    %s87 = sor.u32 %s85, %s86
    %p88 = scmp.eq.s32.totalorder %s87, 0
    %s90 = sadd.s32 %s89, 1
    %s91 = scalar_select %p88, %s89, %s90
    %p94 = pneg %p88
    %p95 = scmp.eq.s32.totalorder %s11, 3
    %p96 = por %p94, %p95
    %p97 = scmp.ne.s32.totalorder %s89, %s92
    %p98 = scmp.eq.s32.totalorder %s11, 0
    %p99 = por %p97, %p98
    %p100 = scmp.ne.s32.totalorder %s89, %s92
    %p101 = scmp.eq.s32.totalorder %s16, 3
    %p102 = por %p100, %p101
    %p103 = scmp.ne.s32.totalorder %s92, %s93
    %p104 = scmp.eq.s32.totalorder %s16, 0
    %p105 = por %p103, %p104
    %p106 = scmp.ne.s32.totalorder %s92, %s93
    %p107 = scmp.eq.s32.totalorder %s17, 3
    %p108 = por %p106, %p107
    %p110 = scmp.ne.s32.totalorder %s93, %s109
    %p111 = scmp.eq.s32.totalorder %s17, 0
    %p112 = por %p110, %p111
    %s113 = ssub.s32 %s18, %s30
    %s114 = ssub.s32 %s19, %s26
    %s115 = sor.u32 %s113, %s114
    %p116 = scmp.eq.s32.totalorder %s115, 0
    %s118 = sadd.s32 %s117, 1
    %s119 = scalar_select %p116, %s117, %s118
    %p122 = pneg %p116
    %p123 = scmp.eq.s32.totalorder %s11, 3
    %p124 = por %p122, %p123
    %p125 = scmp.ne.s32.totalorder %s117, %s120
    %p126 = scmp.eq.s32.totalorder %s11, 0
    %p127 = por %p125, %p126
    %p128 = scmp.ne.s32.totalorder %s117, %s120
    %p129 = scmp.eq.s32.totalorder %s16, 3
    %p130 = por %p128, %p129
    %p131 = scmp.ne.s32.totalorder %s120, %s121
    %p132 = scmp.eq.s32.totalorder %s16, 0
    %p133 = por %p131, %p132
    %p134 = scmp.ne.s32.totalorder %s120, %s121
    %p135 = scmp.eq.s32.totalorder %s17, 3
    %p136 = por %p134, %p135
    %p138 = scmp.ne.s32.totalorder %s121, %s137
    %p139 = scmp.eq.s32.totalorder %s17, 0
    %p140 = por %p138, %p139
    %s141 = ssub.s32 %s18, %s30
    %s142 = ssub.s32 %s19, %s26
    %s143 = sor.u32 %s141, %s142
    %p144 = scmp.eq.s32.totalorder %s143, 0
    %s146 = sadd.s32 %s145, 1
    %s147 = scalar_select %p144, %s145, %s146
    %p150 = pneg %p144
    %p151 = scmp.eq.s32.totalorder %s11, 3
    %p152 = por %p150, %p151
    %p153 = scmp.ne.s32.totalorder %s145, %s148
    %p154 = scmp.eq.s32.totalorder %s11, 0
    %p155 = por %p153, %p154
    %p156 = scmp.ne.s32.totalorder %s145, %s148
    %p157 = scmp.eq.s32.totalorder %s16, 3
    %p158 = por %p156, %p157
    %p159 = scmp.ne.s32.totalorder %s148, %s149
    %p160 = scmp.eq.s32.totalorder %s16, 0
    %p161 = por %p159, %p160
    %p162 = scmp.ne.s32.totalorder %s148, %s149
    %p163 = scmp.eq.s32.totalorder %s17, 3
    %p164 = por %p162, %p163
    %p166 = scmp.ne.s32.totalorder %s149, %s165
    %p167 = scmp.eq.s32.totalorder %s17, 0
    %p168 = por %p166, %p167
    %p169 = scmp.le.s32.totalorder 1, %s11
    %p170 = scmp.lt.s32.totalorder %s11, 5
    %p171 = pnand %p169, %p170
    %p172 = pneg %p171
    // Predicated region
    $region9: #{deconv2d_forward.2} parent=5 // pred_check
      _
    $region10: #{deconv2d_forward.2} parent=5 // pred_check_branch
      %174 = sbr.rel (%p171) target = $region12
    $region11: #{deconv2d_forward.2} parent=5 // pred_region
      %s175 = ssub.s32 %s11, 1
    $region12: #{deconv2d_forward.2} parent=5 // pred_fallthru
      _
    %p176 = scmp.lt.s32.totalorder %s11, 4
    // Predicated region
    $region13: #{deconv2d_forward.2} parent=5 // pred_check
      %p177 = pneg %p176
    $region14: #{deconv2d_forward.2} parent=5 // pred_check_branch
      %179 = sbr.rel (%p177) target = $region16
    $region15: #{deconv2d_forward.2} parent=5 // pred_region
      // Predicated region
      $region17: #{deconv2d_forward.2} parent=15 // pred_check
        %p180 = pneg %p43
      $region18: #{deconv2d_forward.2} parent=15 // pred_check_branch
        %182 = sbr.rel (%p180) target = $region20
      $region19: #{deconv2d_forward.2} parent=15 // pred_region
        %p183 = scmp.lt.s32.totalorder %s18, 3
        %s184 = scalar_select %p183, %s18, 3
        %s185 = smul.addr %s184, 4
        %s186 = scalar_lea.vmem %s0, %s185
      $region20: #{deconv2d_forward.2} parent=15 // pred_fallthru
        _
      // Predicated region
      $region21: #{deconv2d_forward.2} parent=15 // pred_check
        %p187 = pneg %p71
      $region22: #{deconv2d_forward.2} parent=15 // pred_check_branch
        %189 = sbr.rel (%p187) target = $region24
      $region23: #{deconv2d_forward.2} parent=15 // pred_region
        %s190 = smul.u32 4, %s19
        %p191 = scmp.lt.s32.totalorder %s18, 3
        %s192 = scalar_select %p191, %s18, 3
        %p193 = scmp.lt.s32.totalorder %s190, 3
        %s194 = scalar_select %p193, %s190, 3
        %s195 = smul.addr %s192, 8
        %s196 = sadd.s32 %s194, %s195
        %s197 = smul.addr %s196, 4
        %s198 = scalar_lea.vmem %s1, %s197
        %s199 = smul.u32 4, %s19
      $region24: #{deconv2d_forward.2} parent=15 // pred_fallthru
        _
    $region16: #{deconv2d_forward.2} parent=5 // pred_fallthru
      _
    %p200 = scmp.le.s32.totalorder 1, %s11
    %p201 = scmp.lt.s32.totalorder %s11, 5
    %p202 = pnand %p200, %p201
    %p203 = pneg %p202
    // Predicated region
    $region25: #{deconv2d_forward.2} parent=5 // pred_check
      _
    $region26: #{deconv2d_forward.2} parent=5 // pred_check_branch
      %205 = sbr.rel (%p202) target = $region28
    $region27: #{deconv2d_forward.2} parent=5 // pred_region
      %s206 = ssub.s32 %s11, 1
      %p207 = scmp.lt.s32.totalorder %s20, 3
      %s208 = scalar_select %p207, %s20, 3
      %s209 = smul.addr %s208, 4
      %s210 = scalar_lea.vmem %s0, %s209
      %p211 = pneg %p49
      %p212 = pneg %p46
      %s213 = smul.u32 4, %s21
      %p214 = scmp.lt.s32.totalorder %s20, 3
      %s215 = scalar_select %p214, %s20, 3
      %p216 = scmp.lt.s32.totalorder %s213, 3
      %s217 = scalar_select %p216, %s213, 3
      %s218 = smul.addr %s215, 8
      %s219 = sadd.s32 %s217, %s218
      %s220 = smul.addr %s219, 4
      %s221 = scalar_lea.vmem %s1, %s220
      %p222 = pneg %p77
      %p223 = pneg %p74
      %p224 = pneg %p105
      %p225 = pneg %p102
      %s226 = smul.u32 4, %s21
      %p227 = scmp.lt.s32.totalorder %s20, 3
      %s228 = scalar_select %p227, %s20, 3
      %p229 = scmp.lt.s32.totalorder %s226, 3
      %s230 = scalar_select %p229, %s226, 3
      %s231 = smul.addr %s228, 4
      %s232 = sadd.s32 %s230, %s231
      %s233 = smul.addr %s232, 4
      %s234 = scalar_lea.vmem %s2, %s233
      %p235 = pneg %p133
      %p236 = pneg %p130
      %p237 = scmp.lt.s32.totalorder %s20, 3
      %s238 = scalar_select %p237, %s20, 3
      %p239 = scmp.lt.s32.totalorder %s21, 0
      %s240 = scalar_select %p239, %s21, 0
      %s241 = sadd.s32 %s240, %s238
      %s242 = smul.addr %s241, 8
      %s243 = scalar_lea.vmem %s3, %s242
      %p244 = pneg %p161
      %p245 = pneg %p158
      %p246 = scmp.lt.s32.totalorder %s20, 3
      %s247 = scalar_select %p246, %s20, 3
      %p248 = scmp.lt.s32.totalorder %s21, 0
      %s249 = scalar_select %p248, %s21, 0
      %s250 = sadd.s32 %s249, %s247
      %s251 = smul.addr %s250, 8
      %s252 = scalar_lea.vmem %s4, %s251
      %p253 = scmp.lt.s32.totalorder %s20, 3
      %s254 = scalar_select %p253, %s20, 3
      %s255 = smul.addr %s254, 4
      %s256 = scalar_lea.vmem %s0, %s255
      %s257 = smul.u32 4, %s21
      %p258 = scmp.lt.s32.totalorder %s20, 3
      %s259 = scalar_select %p258, %s20, 3
      %p260 = scmp.lt.s32.totalorder %s257, 3
      %s261 = scalar_select %p260, %s257, 3
      %s262 = smul.addr %s259, 8
      %s263 = sadd.s32 %s261, %s262
      %s264 = smul.addr %s263, 4
      %s265 = scalar_lea.vmem %s1, %s264
      %s266 = smul.u32 4, %s21
      %s267 = smul.u32 4, %s21
      %p268 = scmp.lt.s32.totalorder %s20, 3
      %s269 = scalar_select %p268, %s20, 3
      %p270 = scmp.lt.s32.totalorder %s267, 3
      %s271 = scalar_select %p270, %s267, 3
      %s272 = smul.addr %s269, 4
      %s273 = sadd.s32 %s271, %s272
      %s274 = smul.addr %s273, 4
      %s275 = scalar_lea.vmem %s2, %s274
      %s276 = smul.u32 4, %s21
      %p277 = scmp.lt.s32.totalorder %s20, 3
      %s278 = scalar_select %p277, %s20, 3
      %p279 = scmp.lt.s32.totalorder %s21, 0
      %s280 = scalar_select %p279, %s21, 0
      %s281 = sadd.s32 %s280, %s278
      %s282 = smul.addr %s281, 8
      %s283 = scalar_lea.vmem %s3, %s282
      %p284 = scmp.lt.s32.totalorder %s20, 3
      %s285 = scalar_select %p284, %s20, 3
      %p286 = scmp.lt.s32.totalorder %s21, 0
      %s287 = scalar_select %p286, %s21, 0
      %s288 = sadd.s32 %s287, %s285
      %s289 = smul.addr %s288, 8
      %s290 = scalar_lea.vmem %s4, %s289
      %v292 = vld [vmem:[%s256] sm:$0xf]
      %v293 = vld [vmem:[%s265] sm:$0xff]
      %v294 = vld [vmem:[%s265 + $0x8] sm:$0xff]
      %v295 = vld [vmem:[%s265 + $0x10] sm:$0xff]
      %v296 = vld [vmem:[%s265 + $0x18] sm:$0xff]
      %v301 = vunpack.c.l.b16 %v293
      %v302 = vunpack.c.h.b16 %v293
      %v303 = vunpack.c.l.b16 %v294
      %v304 = vunpack.c.h.b16 %v294
      %v305 = vunpack.c.l.b16 %v295
      %v306 = vunpack.c.h.b16 %v295
      %v307 = vunpack.c.l.b16 %v296
      %v308 = vunpack.c.h.b16 %v296
      %v309 = vpack.c.b16 %v305, %v301
      %v310 = vpack.c.b16 %v306, %v302
      %v311 = vpack.c.b16 %v307, %v303
      %v312 = vpack.c.b16 %v308, %v304
      %vm317 = vcmask 130048
      %v319 = vsel %vm317, %v292, 0
      %321 = vmatprep.subr.bf16.mxu0 %v310
      %322 = vmatpush1.bf16.msra.mxu0 %v309
      %323 = vmatprep.subr.bf16.mxu0 0
      %324 = vmatpush1.bf16.msra.mxu0 0
      %325 = vmatprep.subr.bf16.mxu0 0
      %326 = vmatpush1.bf16.msra.mxu0 0
      %327 = vmatprep.subr.bf16.mxu0 0
      %328 = vmatpush1.bf16.msra.mxu0 0
      %329 = vmatprep.subr.bf16.mxu0 0
      %330 = vmatpush1.bf16.msra.mxu0 0
      %331 = vmatprep.subr.bf16.mxu0 0
      %332 = vmatpush1.bf16.msra.mxu0 0
      %333 = vmatprep.subr.bf16.mxu0 0
      %334 = vmatpush1.bf16.msra.mxu0 0
      %335 = vmatprep.subr.bf16.mxu0 0
      %336 = vmatpush1.bf16.msra.mxu0 0
      %337 = vmatprep.subr.bf16.mxu0 0
      %338 = vmatpush1.bf16.msra.mxu0 0
      %339 = vmatprep.subr.bf16.mxu0 0
      %340 = vmatpush1.bf16.msra.mxu0 0
      %341 = vmatprep.subr.bf16.mxu0 0
      %342 = vmatpush1.bf16.msra.mxu0 0
      %343 = vmatprep.subr.bf16.mxu0 0
      %344 = vmatpush1.bf16.msra.mxu0 0
      %345 = vmatprep.subr.bf16.mxu0 0
      %346 = vmatpush1.bf16.msra.mxu0 0
      %347 = vmatprep.subr.bf16.mxu0 0
      %348 = vmatpush1.bf16.msra.mxu0 0
      %349 = vmatprep.subr.bf16.mxu0 0
      %350 = vmatpush1.bf16.msra.mxu0 0
      %351 = vmatprep.subr.bf16.mxu0 0
      %352 = vmatpush1.bf16.msra.mxu0 0
      %353 = vmatprep.mubr.bf16.mxu0 0
      %354 = vmatmul.mubr.bf16.gmra.mrb[0].mxu0 %v319
      %v355 = vpop.f32.mrb[0].mxu0
      %v356 = vadd.f32 0.0, %v355
      %v357 = vpop.f32.mrb[0].mxu0
      %v358 = vadd.f32 0.0, %v357
      %v359 = vpop.f32.mrb[0].mxu0
      %v360 = vpop.f32.mrb[0].mxu0
      %361 = vdwg.mxu0
      %362 = vmatprep.subr.bf16.mxu0 %v312
      %363 = vmatpush1.bf16.msra.mxu0 %v311
      %364 = vmatprep.subr.bf16.mxu0 0
      %365 = vmatpush1.bf16.msra.mxu0 0
      %366 = vmatprep.subr.bf16.mxu0 0
      %367 = vmatpush1.bf16.msra.mxu0 0
      %368 = vmatprep.subr.bf16.mxu0 0
      %369 = vmatpush1.bf16.msra.mxu0 0
      %370 = vmatprep.subr.bf16.mxu0 0
      %371 = vmatpush1.bf16.msra.mxu0 0
      %372 = vmatprep.subr.bf16.mxu0 0
      %373 = vmatpush1.bf16.msra.mxu0 0
      %374 = vmatprep.subr.bf16.mxu0 0
      %375 = vmatpush1.bf16.msra.mxu0 0
      %376 = vmatprep.subr.bf16.mxu0 0
      %377 = vmatpush1.bf16.msra.mxu0 0
      %378 = vmatprep.subr.bf16.mxu0 0
      %379 = vmatpush1.bf16.msra.mxu0 0
      %380 = vmatprep.subr.bf16.mxu0 0
      %381 = vmatpush1.bf16.msra.mxu0 0
      %382 = vmatprep.subr.bf16.mxu0 0
      %383 = vmatpush1.bf16.msra.mxu0 0
      %384 = vmatprep.subr.bf16.mxu0 0
      %385 = vmatpush1.bf16.msra.mxu0 0
      %386 = vmatprep.subr.bf16.mxu0 0
      %387 = vmatpush1.bf16.msra.mxu0 0
      %388 = vmatprep.subr.bf16.mxu0 0
      %389 = vmatpush1.bf16.msra.mxu0 0
      %390 = vmatprep.subr.bf16.mxu0 0
      %391 = vmatpush1.bf16.msra.mxu0 0
      %392 = vmatprep.subr.bf16.mxu0 0
      %393 = vmatpush1.bf16.msra.mxu0 0
      %394 = vmatprep.mubr.bf16.mxu0 0
      %395 = vmatmul.mubr.bf16.gmra.mrb[0].mxu0 %v319
      %v396 = vpop.f32.mrb[0].mxu0
      %v397 = vadd.f32 0.0, %v396
      %v398 = vpop.f32.mrb[0].mxu0
      %v399 = vadd.f32 0.0, %v398
      %v400 = vpop.f32.mrb[0].mxu0
      %v401 = vpop.f32.mrb[0].mxu0
      %402 = vdwg.mxu0
      %v403 = vpack.c.bf16 %v356, %v356
      %v404 = vpack.c.bf16 %v358, %v358
      %v405 = vpack.c.bf16 %v397, %v397
      %v406 = vpack.c.bf16 %v399, %v399
      %v411 = vunpack.c.l.b16 %v403
      %v412 = vunpack.c.l.b16 %v404
      %v413 = vunpack.c.l.b16 %v405
      %v414 = vunpack.c.l.b16 %v406
      %v415 = vpack.c.b16 %v412, %v411
      %v416 = vpack.c.b16 %v414, %v413
      %419 = vst [vmem:[%s275] sm:$0xff] %v415
      %420 = vst [vmem:[%s275 + $0x8] sm:$0xff] %v416
      %v421 = vadd.f32 %v356, %v358
      %v422 = vadd.f32 %v421, %v397
      %v423 = vadd.f32 %v422, %v399
      %424 = vadd.xlane.f32.xlu0 %v423
      %v425 = vpop.xlane.xlu0 %424
      %vm426 = vcmask 7168
      %427 = vst.msk [vmem:[%s283] sm:$0xff] %vm426, %v425
      %v428 = vmul.f32 %v356, %v356
      %v429 = vmul.f32 %v358, %v358
      %v430 = vmul.f32 %v397, %v397
      %v431 = vmul.f32 %v399, %v399
      %v432 = vadd.f32 %v428, %v429
      %v433 = vadd.f32 %v432, %v430
      %v434 = vadd.f32 %v433, %v431
      %435 = vadd.xlane.f32.xlu0 %v434
      %v436 = vpop.xlane.xlu0 %435
      %437 = vst.msk [vmem:[%s290] sm:$0xff] %vm426, %v436
      %s438 = smul.u32 4, %s21
      %p439 = scmp.lt.s32.totalorder %s20, 3
      %s440 = scalar_select %p439, %s20, 3
      %p441 = scmp.lt.s32.totalorder %s438, 3
      %s442 = scalar_select %p441, %s438, 3
      %s443 = smul.addr %s440, 4
      %s444 = sadd.s32 %s442, %s443
      %s445 = smul.addr %s444, 4
      %s446 = scalar_lea.vmem %s2, %s445
      %p447 = scmp.lt.s32.totalorder %s20, 3
      %s448 = scalar_select %p447, %s20, 3
      %p449 = scmp.lt.s32.totalorder %s21, 0
      %s450 = scalar_select %p449, %s21, 0
      %s451 = sadd.s32 %s450, %s448
      %s452 = smul.addr %s451, 8
      %s453 = scalar_lea.vmem %s3, %s452
      %p454 = scmp.lt.s32.totalorder %s20, 3
      %s455 = scalar_select %p454, %s20, 3
      %p456 = scmp.lt.s32.totalorder %s21, 0
      %s457 = scalar_select %p456, %s21, 0
      %s458 = sadd.s32 %s457, %s455
      %s459 = smul.addr %s458, 8
      %s460 = scalar_lea.vmem %s4, %s459
      // Predicated region
      $region29: #{deconv2d_forward.2} parent=27 // pred_check
        %p461 = pneg %p102
      $region30: #{deconv2d_forward.2} parent=27 // pred_check_branch
        %463 = sbr.rel (%p461) target = $region32
      $region31: #{deconv2d_forward.2} parent=27 // pred_region
        %s464 = smul.u32 4, %s21
      $region32: #{deconv2d_forward.2} parent=27 // pred_fallthru
        _
      // Predicated region
      $region33: #{deconv2d_forward.2} parent=27 // pred_check
        %p465 = pneg %p130
      $region34: #{deconv2d_forward.2} parent=27 // pred_check_branch
        %467 = sbr.rel (%p465) target = $region36
      $region35: #{deconv2d_forward.2} parent=27 // pred_region
        _
      $region36: #{deconv2d_forward.2} parent=27 // pred_fallthru
        _
      // Predicated region
      $region37: #{deconv2d_forward.2} parent=27 // pred_check
        %p468 = pneg %p158
      $region38: #{deconv2d_forward.2} parent=27 // pred_check_branch
        %470 = sbr.rel (%p468) target = $region40
      $region39: #{deconv2d_forward.2} parent=27 // pred_region
        _
      $region40: #{deconv2d_forward.2} parent=27 // pred_fallthru
        _
    $region28: #{deconv2d_forward.2} parent=5 // pred_fallthru
      _
    %p471 = scmp.le.s32.totalorder 2, %s11
    // Predicated region
    $region41: #{deconv2d_forward.2} parent=5 // pred_check
      %p472 = pneg %p471
    $region42: #{deconv2d_forward.2} parent=5 // pred_check_branch
      %474 = sbr.rel (%p472) target = $region44
    $region43: #{deconv2d_forward.2} parent=5 // pred_region
      %s475 = ssub.s32 %s11, 2
      // Predicated region
      $region45: #{deconv2d_forward.2} parent=43 // pred_check
        %p476 = pneg %p108
      $region46: #{deconv2d_forward.2} parent=43 // pred_check_branch
        %478 = sbr.rel (%p476) target = $region48
      $region47: #{deconv2d_forward.2} parent=43 // pred_region
        %s479 = smul.u32 4, %s23
        %p480 = scmp.lt.s32.totalorder %s22, 3
        %s481 = scalar_select %p480, %s22, 3
        %p482 = scmp.lt.s32.totalorder %s479, 3
        %s483 = scalar_select %p482, %s479, 3
        %s484 = smul.addr %s481, 4
        %s485 = sadd.s32 %s483, %s484
        %s486 = smul.addr %s485, 4
        %s487 = scalar_lea.vmem %s2, %s486
      $region48: #{deconv2d_forward.2} parent=43 // pred_fallthru
        _
      // Predicated region
      $region49: #{deconv2d_forward.2} parent=43 // pred_check
        %p488 = pneg %p136
      $region50: #{deconv2d_forward.2} parent=43 // pred_check_branch
        %490 = sbr.rel (%p488) target = $region52
      $region51: #{deconv2d_forward.2} parent=43 // pred_region
        %p491 = scmp.lt.s32.totalorder %s22, 3
        %s492 = scalar_select %p491, %s22, 3
        %p493 = scmp.lt.s32.totalorder %s23, 0
        %s494 = scalar_select %p493, %s23, 0
        %s495 = sadd.s32 %s494, %s492
        %s496 = smul.addr %s495, 8
        %s497 = scalar_lea.vmem %s3, %s496
      $region52: #{deconv2d_forward.2} parent=43 // pred_fallthru
        _
      // Predicated region
      $region53: #{deconv2d_forward.2} parent=43 // pred_check
        %p498 = pneg %p164
      $region54: #{deconv2d_forward.2} parent=43 // pred_check_branch
        %500 = sbr.rel (%p498) target = $region56
      $region55: #{deconv2d_forward.2} parent=43 // pred_region
        %p501 = scmp.lt.s32.totalorder %s22, 3
        %s502 = scalar_select %p501, %s22, 3
        %p503 = scmp.lt.s32.totalorder %s23, 0
        %s504 = scalar_select %p503, %s23, 0
        %s505 = sadd.s32 %s504, %s502
        %s506 = smul.addr %s505, 8
        %s507 = scalar_lea.vmem %s4, %s506
      $region56: #{deconv2d_forward.2} parent=43 // pred_fallthru
        _
    $region44: #{deconv2d_forward.2} parent=5 // pred_fallthru
      _
  $region6: #{deconv2d_forward.2} parent=0 // loop_footer
    %s15 = sadd.s32 1, %s11
  $region7: #{deconv2d_forward.2} parent=0 // loop_footer_branch
    %10 = sbr.rel target = $region3
  $region8: #{deconv2d_forward.2} parent=0 // loop_exit
    _

</llo_original>
